<compile_context>
chip_gen: v5e
topology: v5e:2x2
jax: 0.10.0
libtpu: 0.0.40
codegen_flags: <defaults>
</compile_context>

<pallas_src>
import math
import functools

import jax
import jax.numpy as jnp
from jax.experimental import pallas as pl
from jax.experimental.pallas import tpu as pltpu


# -----------------------------------------------------------------------------
# In-kernel helpers (operate on jnp values inside Pallas kernels)
# -----------------------------------------------------------------------------
def _ln(x, w, b, silu, eps=1e-5):
    """PositionalNorm (LayerNorm over channels) + optional SiLU, f32 math."""
    mu = jnp.mean(x, axis=-1, keepdims=True)
    var = jnp.mean(jnp.square(x - mu), axis=-1, keepdims=True)
    y = (x - mu) * jax.lax.rsqrt(var + eps)
    y = y * w + b
    if silu:
        y = y * jax.nn.sigmoid(y)
    return y


def _conv3x3(buf_ref, h, w_ref, b, H, W, col):
    """3x3 'same' conv via 9-tap MXU accumulation.

    `buf_ref` is a zeroed (2*(W+8)+H*W, Cin) f32 VMEM scratch: the interior
    rows [OFF, OFF+H*W) hold the flattened activation; the guard rows provide
    the vertical zero padding, horizontal wrap-around is masked per tap.
    """
    HW = H * W
    OFF = W + 8
    buf_ref[OFF:OFF + HW, :] = h
    left = col == 0
    right = col == (W - 1)
    Cout = w_ref.shape[-1]
    acc = jnp.zeros((HW, Cout), jnp.float32)
    for di in (-1, 0, 1):
        for dj in (-1, 0, 1):
            start = OFF + di * W + dj
            win = buf_ref[start:start + HW, :]
            if dj == -1:
                win = jnp.where(left, 0.0, win)
            elif dj == 1:
                win = jnp.where(right, 0.0, win)
            t = (di + 1) * 3 + (dj + 1)
            acc = acc + jnp.dot(win.astype(jnp.bfloat16), w_ref[t],
                                preferred_element_type=jnp.float32)
    return acc + b


# -----------------------------------------------------------------------------
# Kernels
# -----------------------------------------------------------------------------
def _resblock_same_kernel(*refs, H, W, Ci, Co, start_act, has_id, return_std,
                          id_silu):
    i = 0
    x_ref = refs[i]; i += 1
    if start_act:
        ln0w, ln0b = refs[i], refs[i + 1]; i += 2
    w1, b1, ln1w, ln1b = refs[i:i + 4]; i += 4
    w2, b2, ln2w, ln2b = refs[i:i + 4]; i += 4
    w3, b3 = refs[i:i + 2]; i += 2
    if has_id:
        ilw, ilb, wid, bid = refs[i:i + 4]; i += 4
    if return_std:
        mu_ref, std_ref = refs[i:i + 2]; i += 2
    else:
        o_ref = refs[i]; i += 1
    buf = refs[i]

    HW = H * W
    buf[...] = jnp.zeros_like(buf)
    col = jax.lax.broadcasted_iota(jnp.int32, (HW, 1), 0) % W

    x = x_ref[...].reshape(HW, Ci)
    h = _ln(x, ln0w[...], ln0b[...], silu=True) if start_act else x
    h = _conv3x3(buf, h, w1, b1[...], H, W, col)
    h = _ln(h, ln1w[...], ln1b[...], silu=True)
    h = _conv3x3(buf, h, w2, b2[...], H, W, col)
    h = _ln(h, ln2w[...], ln2b[...], silu=True)
    h = _conv3x3(buf, h, w3, b3[...], H, W, col)

    if has_id:
        idv = _ln(x, ilw[...], ilb[...], silu=id_silu)
        idv = jnp.dot(idv.astype(jnp.bfloat16), wid[...],
                      preferred_element_type=jnp.float32) + bid[...]
    else:
        idv = x

    if return_std:
        L = Co // 2
        mu_ref[...] = (h[:, :L] + idv).reshape(1, H, W, L)
        std_ref[...] = jnp.exp(0.5 * h[:, L:]).reshape(1, H, W, L)
    else:
        o_ref[...] = (h + idv).reshape(1, H, W, Co)


def _upscale_a_kernel(x_ref, ln0w, ln0b, w1, b1, ln1w, ln1b, wT, bT, lnTw, lnTb,
                      ilw, ilb, wid, bid, hpar_ref, yid_ref, buf, *, H, W, Ci, Co):
    HW = H * W
    OFF = W + 8
    buf[...] = jnp.zeros_like(buf)
    col = jax.lax.broadcasted_iota(jnp.int32, (HW, 1), 0) % W
    left = col == 0
    right = col == (W - 1)

    x = x_ref[...].reshape(HW, Ci)
    h = _ln(x, ln0w[...], ln0b[...], silu=True)
    h = _conv3x3(buf, h, w1, b1[...], H, W, col)
    h = _ln(h, ln1w[...], ln1b[...], silu=True)

    # ConvTranspose2d(k=4, s=2, p=1): per output parity r (along each dim),
    # out[2m+r] gathers input offsets/kernel taps:
    #   r=0 -> (offset 0, k=1), (offset -1, k=3) ; r=1 -> (+1, k=0), (0, k=2)
    buf[OFF:OFF + HW, :] = h
    taps = {0: ((0, 1), (-1, 3)), 1: ((1, 0), (0, 2))}
    for rh in (0, 1):
        for rw in (0, 1):
            acc = jnp.zeros((HW, Ci), jnp.float32)
            for (dh, kh) in taps[rh]:
                for (dw, kw) in taps[rw]:
                    start = OFF + dh * W + dw
                    win = buf[start:start + HW, :]
                    if dw == -1:
                        win = jnp.where(left, 0.0, win)
                    elif dw == 1:
                        win = jnp.where(right, 0.0, win)
                    acc = acc + jnp.dot(win.astype(jnp.bfloat16), wT[kh * 4 + kw],
                                        preferred_element_type=jnp.float32)
            acc = acc + bT[...]
            # PositionalNorm is per-pixel over channels -> commutes with the
            # parity interleave, so fuse it (+SiLU) here.
            acc = _ln(acc, lnTw[...], lnTb[...], silu=True)
            hpar_ref[0, 2 * rh + rw] = acc.reshape(H, W, Ci)

    # identity path: PositionalNorm + SiLU + 1x1 conv (bilinear upsample is
    # linear and done in glue on the tiny result)
    idv = _ln(x, ilw[...], ilb[...], silu=True)
    idv = jnp.dot(idv.astype(jnp.bfloat16), wid[...],
                  preferred_element_type=jnp.float32) + bid[...]
    yid_ref[...] = idv.reshape(1, H, W, Co)


def _conv_block_kernel(*refs, H, W, Ci, Co, pre_norm, has_res):
    i = 0
    x_ref = refs[i]; i += 1
    if pre_norm:
        lnw, lnb = refs[i:i + 2]; i += 2
    w, b = refs[i:i + 2]; i += 2
    if has_res:
        r_ref = refs[i]; i += 1
    o_ref = refs[i]; i += 1
    buf = refs[i]

    HW = H * W
    buf[...] = jnp.zeros_like(buf)
    col = jax.lax.broadcasted_iota(jnp.int32, (HW, 1), 0) % W
    x = x_ref[...].reshape(HW, Ci)
    h = _ln(x, lnw[...], lnb[...], silu=True) if pre_norm else x
    h = _conv3x3(buf, h, w, b[...], H, W, col)
    if has_res:
        h = h + r_ref[...].reshape(HW, Co)
    o_ref[...] = h.reshape(1, H, W, Co)


def _sample_kernel(mu_ref, s_ref, eps_ref, x_ref, lp_ref, *, s_is_log, sigma_eps):
    mu = mu_ref[...]
    s = s_ref[...]
    sigma = (jnp.exp(0.5 * s) if s_is_log else s) + sigma_eps
    x = mu + sigma * eps_ref[...]
    t = (x - mu) / sigma
    lp = -0.5 * t * t - jnp.log(sigma) - 0.5 * math.log(2.0 * math.pi)
    x_ref[...] = x
    lp_ref[...] = jnp.sum(lp, axis=-1, keepdims=True)


# -----------------------------------------------------------------------------
# pallas_call wrappers
# -----------------------------------------------------------------------------
def _bspec_batch(block_shape):
    n = len(block_shape)
    return pl.BlockSpec(block_shape, lambda b, _n=n: (b,) + (0,) * (_n - 1))


def _bspec_const(shape):
    n = len(shape)
    return pl.BlockSpec(shape, lambda b, _n=n: (0,) * _n)


def _compiler_params():
    return pltpu.CompilerParams(dimension_semantics=("parallel",),
                                vmem_limit_bytes=32 * 1024 * 1024)


def _nbytes(arrs):
    return int(sum(a.size * a.dtype.itemsize for a in arrs))


def resblock_same(x, p):
    B, H, W, Ci = x.shape
    Co = p["out_chan"]
    start_act = p["start_activation"]
    has_id = p["id"] is not None
    return_std = p["return_std"]
    L = Co // 2 if return_std else None
    HW = H * W
    R = 2 * (W + 8) + HW

    inputs = [x]
    in_specs = [_bspec_batch((1, H, W, Ci))]

    def add(arr):
        inputs.append(arr)
        in_specs.append(_bspec_const(arr.shape))

    if start_act:
        add(p["ln0"]["w"]); add(p["ln0"]["b"])
    add(p["conv1"]["w"]); add(p["conv1"]["b"]); add(p["ln1"]["w"]); add(p["ln1"]["b"])
    add(p["conv2"]["w"]); add(p["conv2"]["b"]); add(p["ln2"]["w"]); add(p["ln2"]["b"])
    add(p["conv3"]["w"]); add(p["conv3"]["b"])
    if has_id:
        add(p["id"]["ln"]["w"]); add(p["id"]["ln"]["b"])
        add(p["id"]["conv"]["w"]); add(p["id"]["conv"]["b"])

    if return_std:
        out_shape = (jax.ShapeDtypeStruct((B, H, W, L), jnp.float32),
                     jax.ShapeDtypeStruct((B, H, W, L), jnp.float32))
        out_specs = (_bspec_batch((1, H, W, L)), _bspec_batch((1, H, W, L)))
        out_bytes = 2 * B * HW * L * 4
    else:
        out_shape = jax.ShapeDtypeStruct((B, H, W, Co), jnp.float32)
        out_specs = _bspec_batch((1, H, W, Co))
        out_bytes = B * HW * Co * 4

    id_out = (L if return_std else Co) if has_id else 0
    flops = 2 * B * HW * (9 * Ci * Ci * 2 + 9 * Ci * Co + Ci * id_out)
    cost = pl.CostEstimate(flops=int(flops),
                           transcendentals=int(6 * B * HW * Ci),
                           bytes_accessed=_nbytes(inputs) + out_bytes)

    kernel = functools.partial(
        _resblock_same_kernel, H=H, W=W, Ci=Ci, Co=Co, start_act=start_act,
        has_id=has_id, return_std=return_std,
        id_silu=(p["id"]["silu"] if has_id else False))

    return pl.pallas_call(
        kernel,
        grid=(B,),
        in_specs=in_specs,
        out_specs=out_specs,
        out_shape=out_shape,
        scratch_shapes=[pltpu.VMEM((R, Ci), jnp.float32)],
        compiler_params=_compiler_params(),
        cost_estimate=cost,
    )(*inputs)


def conv_block(x, conv_p, ln=None, residual=None):
    """Fused [PositionalNorm+SiLU] + 3x3 conv + bias [+ residual add]."""
    B, H, W, Ci = x.shape
    Co = conv_p["w"].shape[-1]
    HW = H * W
    R = 2 * (W + 8) + HW

    inputs = [x]
    in_specs = [_bspec_batch((1, H, W, Ci))]
    if ln is not None:
        inputs += [ln["w"], ln["b"]]
        in_specs += [_bspec_const(ln["w"].shape), _bspec_const(ln["b"].shape)]
    inputs += [conv_p["w"], conv_p["b"]]
    in_specs += [_bspec_const(conv_p["w"].shape), _bspec_const(conv_p["b"].shape)]
    if residual is not None:
        inputs += [residual]
        in_specs += [_bspec_batch((1, H, W, Co))]

    kernel = functools.partial(_conv_block_kernel, H=H, W=W, Ci=Ci, Co=Co,
                               pre_norm=(ln is not None),
                               has_res=(residual is not None))
    cost = pl.CostEstimate(flops=int(2 * B * HW * 9 * Ci * Co),
                           transcendentals=int(2 * B * HW * Ci),
                           bytes_accessed=_nbytes(inputs) + B * HW * Co * 4)
    return pl.pallas_call(
        kernel,
        grid=(B,),
        in_specs=in_specs,
        out_specs=_bspec_batch((1, H, W, Co)),
        out_shape=jax.ShapeDtypeStruct((B, H, W, Co), jnp.float32),
        scratch_shapes=[pltpu.VMEM((R, Ci), jnp.float32)],
        compiler_params=_compiler_params(),
        cost_estimate=cost,
    )(*inputs)


def _parity_interleave(par):
    """(B, 4, H, W, C) with parity p = 2*rh + rw  ->  (B, 2H, 2W, C)."""
    B, _, H, W, C = par.shape
    t = par.reshape(B, 2, 2, H, W, C)
    t = jnp.transpose(t, (0, 3, 1, 4, 2, 5))
    return t.reshape(B, 2 * H, 2 * W, C)


def _bilinear_up2(y):
    """2x bilinear upsample (PyTorch align_corners=False), NHWC, plain XLA."""
    def up_h(a):
        prev = jnp.concatenate([a[:, :1], a[:, :-1]], axis=1)
        nxt = jnp.concatenate([a[:, 1:], a[:, -1:]], axis=1)
        even = 0.25 * prev + 0.75 * a
        odd = 0.75 * a + 0.25 * nxt
        s = jnp.stack([even, odd], axis=2)
        return s.reshape(a.shape[0], 2 * a.shape[1], a.shape[2], a.shape[3])

    def up_w(a):
        prev = jnp.concatenate([a[:, :, :1], a[:, :, :-1]], axis=2)
        nxt = jnp.concatenate([a[:, :, 1:], a[:, :, -1:]], axis=2)
        even = 0.25 * prev + 0.75 * a
        odd = 0.75 * a + 0.25 * nxt
        s = jnp.stack([even, odd], axis=3)
        return s.reshape(a.shape[0], a.shape[1], 2 * a.shape[2], a.shape[3])

    return up_w(up_h(y))


def resblock_upscale(x, p):
    assert p["start_activation"] and p["id"] is not None
    B, H, W, Ci = x.shape
    Co = p["out_chan"]
    HW = H * W
    R = 2 * (W + 8) + HW

    inputs = [x, p["ln0"]["w"], p["ln0"]["b"], p["conv1"]["w"], p["conv1"]["b"],
              p["ln1"]["w"], p["ln1"]["b"], p["convT"]["w"], p["convT"]["b"],
              p["ln2"]["w"], p["ln2"]["b"], p["id"]["ln"]["w"], p["id"]["ln"]["b"],
              p["id"]["conv"]["w"], p["id"]["conv"]["b"]]
    in_specs = [_bspec_batch((1, H, W, Ci))] + [_bspec_const(a.shape) for a in inputs[1:]]

    kernel_a = functools.partial(_upscale_a_kernel, H=H, W=W, Ci=Ci, Co=Co)
    flops = 2 * B * HW * (9 * Ci * Ci + 16 * Ci * Ci + Ci * Co)
    cost = pl.CostEstimate(flops=int(flops),
                           transcendentals=int(8 * B * HW * Ci),
                           bytes_accessed=_nbytes(inputs) + B * HW * (4 * Ci + Co) * 4)
    hpar, yid = pl.pallas_call(
        kernel_a,
        grid=(B,),
        in_specs=in_specs,
        out_specs=(_bspec_batch((1, 4, H, W, Ci)), _bspec_batch((1, H, W, Co))),
        out_shape=(jax.ShapeDtypeStruct((B, 4, H, W, Ci), jnp.float32),
                   jax.ShapeDtypeStruct((B, H, W, Co), jnp.float32)),
        scratch_shapes=[pltpu.VMEM((R, Ci), jnp.float32)],
        compiler_params=_compiler_params(),
        cost_estimate=cost,
    )(*inputs)

    hT = _parity_interleave(hpar)      # (B, 2H, 2W, Ci), already normed + SiLU
    idu = _bilinear_up2(yid)           # (B, 2H, 2W, Co)
    return conv_block(hT, p["conv3"], ln=None, residual=idu)


def resblock_forward(x, p):
    if p["scale"] == "same":
        return resblock_same(x, p)
    if p["scale"] == "upscale":
        return resblock_upscale(x, p)
    # TODO(synk): 'downscale' is never used by Generator.
    raise NotImplementedError(p["scale"])


def sample_logprob(mu, s, eps, *, s_is_log, sigma_eps):
    """x = mu + sigma*eps, log_prob summed per batch row; sigma from s."""
    B, D = mu.shape
    kernel = functools.partial(_sample_kernel, s_is_log=s_is_log,
                               sigma_eps=float(sigma_eps))
    return pl.pallas_call(
        kernel,
        grid=(1,),
        in_specs=[pl.BlockSpec((B, D), lambda i: (0, 0))] * 3,
        out_specs=(pl.BlockSpec((B, D), lambda i: (0, 0)),
                   pl.BlockSpec((B, 1), lambda i: (0, 0))),
        out_shape=(jax.ShapeDtypeStruct((B, D), jnp.float32),
                   jax.ShapeDtypeStruct((B, 1), jnp.float32)),
        compiler_params=pltpu.CompilerParams(dimension_semantics=("arbitrary",)),
    )(mu, s, eps)


# -----------------------------------------------------------------------------
# Parameter construction (deterministic, synthetic)
# -----------------------------------------------------------------------------
def make_ln(c):
    return dict(w=jnp.ones((1, c), jnp.float32), b=jnp.zeros((1, c), jnp.float32))


def make_conv3x3(key, cin, cout):
    k1, k2 = jax.random.split(key)
    w = jax.random.normal(k1, (9, cin, cout), jnp.float32) / math.sqrt(9 * cin)
    b = 0.01 * jax.random.normal(k2, (1, cout), jnp.float32)
    return dict(w=w.astype(jnp.bfloat16), b=b)


def make_conv1x1(key, cin, cout):
    k1, k2 = jax.random.split(key)
    w = jax.random.normal(k1, (cin, cout), jnp.float32) / math.sqrt(cin)
    b = 0.01 * jax.random.normal(k2, (1, cout), jnp.float32)
    return dict(w=w.astype(jnp.bfloat16), b=b)


def make_convt4x4(key, cin, cout):
    k1, k2 = jax.random.split(key)
    w = jax.random.normal(k1, (16, cin, cout), jnp.float32) / math.sqrt(16 * cin)
    b = 0.01 * jax.random.normal(k2, (1, cout), jnp.float32)
    return dict(w=w.astype(jnp.bfloat16), b=b)


def make_resblock(key, ci, co, scale="same", return_std=False, start_activation=True):
    assert scale in ("same", "upscale")
    ks = jax.random.split(key, 4)
    p = dict(scale=scale, in_chan=ci, out_chan=co, return_std=return_std,
             start_activation=start_activation)
    p["ln0"] = make_ln(ci) if start_activation else None
    p["conv1"] = make_conv3x3(ks[0], ci, ci)
    p["ln1"] = make_ln(ci)
    if scale == "same":
        p["conv2"] = make_conv3x3(ks[1], ci, ci)
    else:
        p["convT"] = make_convt4x4(ks[1], ci, ci)
    p["ln2"] = make_ln(ci)
    p["conv3"] = make_conv3x3(ks[2], ci, co)
    p["id"] = None
    if ci != co or scale == "upscale":
        id_out = co // 2 if return_std else co
        p["id"] = dict(ln=make_ln(ci),
                       silu=(start_activation or scale == "upscale"),
                       conv=make_conv1x1(ks[3], ci, id_out))
    return p


def make_generator(key, out_chan=3, latent_channels=8, depth=1, x_dist="gaussian"):
    L = latent_channels
    oc_out = 2 * out_chan if x_dist == "gaussian" else out_chan
    keys = jax.random.split(key, 12 + max(depth - 1, 0))
    decoder = [
        make_resblock(keys[0], L, 128, start_activation=False),
        make_resblock(keys[1], 128, 128),
        make_resblock(keys[2], 128, 128),
        make_resblock(keys[3], 128, 64, scale="upscale"),
        make_resblock(keys[4], 64, 64),
        make_resblock(keys[5], 64, 64),
        make_resblock(keys[6], 64, 64),
        make_resblock(keys[7], 64, 32, scale="upscale"),
        make_resblock(keys[8], 32, 32),
        make_resblock(keys[9], 32, 32),
        make_resblock(keys[10], 32, 32),
    ]
    tail = dict(ln=make_ln(32), conv=make_conv3x3(keys[11], 32, oc_out))
    latent_blocks = []
    for i in range(depth - 1):
        kk = jax.random.split(keys[12 + i], 4)
        latent_blocks.append([
            make_resblock(kk[0], L, 128, start_activation=False),
            make_resblock(kk[1], 128, 128),
            make_resblock(kk[2], 128, 128),
            make_resblock(kk[3], 128, 2 * L, return_std=True),
        ])
    return dict(decoder=decoder, tail=tail, latent_blocks=latent_blocks,
                latent_channels=L, depth=depth, out_chan=out_chan, x_dist=x_dist)


# -----------------------------------------------------------------------------
# Forward pass (matches Generator.forward semantics; dists returned as tuples)
# -----------------------------------------------------------------------------
def generator_forward(params, rng, batch_size):
    B = batch_size
    L = params["latent_channels"]

    z_list, z_dist_list, log_prob_list = [], [], []

    # prior z ~ Normal(0, 1) at (B, L, 8, 8)
    D0 = 8 * 8 * L
    rng, k = jax.random.split(rng)
    eps0 = jax.random.normal(k, (B, D0), jnp.float32)
    zeros = jnp.zeros((B, D0), jnp.float32)
    z_flat, lp0 = sample_logprob(zeros, zeros, eps0, s_is_log=True, sigma_eps=0.0)
    z = z_flat.reshape(B, 8, 8, L)
    z_list.append(jnp.transpose(z, (0, 3, 1, 2)))
    z_dist_list.append((jnp.zeros((B, L, 8, 8), jnp.float32),
                        jnp.ones((B, L, 8, 8), jnp.float32)))
    log_prob_list.append(lp0.reshape(B))

    # latent blocks (only when depth > 1)
    for i in range(params["depth"] - 1):
        blocks = params["latent_blocks"][i]
        h = resblock_same(z, blocks[0])
        h = resblock_same(h, blocks[1])
        h = resblock_same(h, blocks[2])
        mu, std = resblock_same(h, blocks[3])      # return_std: (mu, std) directly
        _, Hz, Wz, _ = mu.shape
        rng, k = jax.random.split(rng)
        eps = jax.random.normal(k, (B, Hz * Wz * L), jnp.float32)
        zf, lp = sample_logprob(mu.reshape(B, -1), std.reshape(B, -1), eps,
                                s_is_log=False, sigma_eps=1e-8)
        z = zf.reshape(B, Hz, Wz, L)
        z_list.append(jnp.transpose(z, (0, 3, 1, 2)))
        z_dist_list.append((jnp.transpose(mu, (0, 3, 1, 2)),
                            jnp.transpose(std, (0, 3, 1, 2)) + 1e-8))
        log_prob_list.append(lp.reshape(B))

    # decoder
    h = z
    for bp in params["decoder"]:
        h = resblock_forward(h, bp)
    h = conv_block(h, params["tail"]["conv"], ln=params["tail"]["ln"], residual=None)

    if params["x_dist"] != "gaussian":
        # TODO(synk): bernoulli x_dist not implemented.
        raise NotImplementedError(params["x_dist"])

    oc = params["out_chan"]
    x_mu = h[..., :oc]
    x_raw = h[..., oc:]
    _, Hh, Wh, _ = x_mu.shape
    rng, k = jax.random.split(rng)
    epsx = jax.random.normal(k, (B, Hh * Wh * oc), jnp.float32)
    xs, lpx = sample_logprob(x_mu.reshape(B, -1), x_raw.reshape(B, -1), epsx,
                             s_is_log=True, sigma_eps=1e-8)
    x_sample = xs.reshape(B, Hh, Wh, oc)
    sigma = jnp.exp(0.5 * x_raw) + 1e-8

    z_list.append(jnp.transpose(x_sample, (0, 3, 1, 2)))
    z_dist_list.append((jnp.transpose(x_mu, (0, 3, 1, 2)),
                        jnp.transpose(sigma, (0, 3, 1, 2))))
    log_prob_list.append(lpx.reshape(B))
    return z_list, z_dist_list, log_prob_list


# -----------------------------------------------------------------------------
if __name__ == "__main__":
    key = jax.random.PRNGKey(0)
    k_param, k_rng = jax.random.split(key)

    params = make_generator(k_param, out_chan=3, latent_channels=8, depth=1,
                            x_dist="gaussian")
    z_list, z_dist_list, log_prob_list = generator_forward(params, k_rng,
                                                           batch_size=2)

    jax.block_until_ready(z_list[-1])
    jax.block_until_ready(z_dist_list[-1][0])
    jax.block_until_ready(log_prob_list[-1])

    assert z_list[0].shape == (2, 8, 8, 8)          # prior z sample (NCHW)
    assert z_list[-1].shape == (2, 3, 32, 32)       # x sample (NCHW)
    assert z_dist_list[0][0].shape == (2, 8, 8, 8)
    assert z_dist_list[-1][0].shape == (2, 3, 32, 32)
    assert log_prob_list[0].shape == (2,)
    assert log_prob_list[-1].shape == (2,)
    assert bool(jnp.all(jnp.isfinite(z_list[-1])))
    assert bool(jnp.all(jnp.isfinite(z_dist_list[-1][1])))
    assert bool(jnp.all(jnp.isfinite(log_prob_list[0])))
    assert bool(jnp.all(jnp.isfinite(log_prob_list[-1])))
    print("KERNEL_OK")
</pallas_src>

<mosaic_0001>
module attributes {stable_mosaic.version = 11 : i64} {
  func.func @_sample_kernel(%arg0: i32, %arg1: memref<2x512xf32, #tpu.memory_space<vmem>>, %arg2: memref<2x512xf32, #tpu.memory_space<vmem>>, %arg3: memref<2x512xf32, #tpu.memory_space<vmem>>, %arg4: memref<2x512xf32, #tpu.memory_space<vmem>>, %arg5: memref<2x1xf32, #tpu.memory_space<vmem>>) attributes {dimension_semantics = [#tpu.dimension_semantics<arbitrary>], iteration_bounds = array<i64: 1>, scalar_prefetch = 0 : i64, scratch_operands = 0 : i64, tpu.core_type = #tpu.core_type<tc>, window_params = [{pipeline_mode = #tpu.pipeline_mode<synchronous>, transform_indices = @transform_0, window_bounds = array<i64: 2, 512>}, {pipeline_mode = #tpu.pipeline_mode<synchronous>, transform_indices = @transform_1, window_bounds = array<i64: 2, 512>}, {pipeline_mode = #tpu.pipeline_mode<synchronous>, transform_indices = @transform_2, window_bounds = array<i64: 2, 512>}, {pipeline_mode = #tpu.pipeline_mode<synchronous>, transform_indices = @transform_3, window_bounds = array<i64: 2, 512>}, {pipeline_mode = #tpu.pipeline_mode<synchronous>, transform_indices = @transform_4, window_bounds = array<i64: 2, 1>}]} {
    %c0 = arith.constant 0 : index
    %c0_0 = arith.constant 0 : index
    %0 = vector.load %arg1[%c0, %c0_0] : memref<2x512xf32, #tpu.memory_space<vmem>>, vector<2x512xf32>
    %c0_1 = arith.constant 0 : index
    %c0_2 = arith.constant 0 : index
    %1 = vector.load %arg2[%c0_1, %c0_2] : memref<2x512xf32, #tpu.memory_space<vmem>>, vector<2x512xf32>
    %cst = arith.constant 5.000000e-01 : f32
    %2 = vector.broadcast %cst : f32 to vector<2x512xf32>
    %3 = arith.mulf %2, %1 : vector<2x512xf32>
    %4 = math.exp %3 : vector<2x512xf32>
    %cst_3 = arith.constant 0.000000e+00 : f32
    %5 = vector.broadcast %cst_3 : f32 to vector<2x512xf32>
    %6 = arith.addf %4, %5 : vector<2x512xf32>
    %c0_4 = arith.constant 0 : index
    %c0_5 = arith.constant 0 : index
    %7 = vector.load %arg3[%c0_4, %c0_5] : memref<2x512xf32, #tpu.memory_space<vmem>>, vector<2x512xf32>
    %8 = arith.mulf %6, %7 : vector<2x512xf32>
    %9 = arith.addf %0, %8 : vector<2x512xf32>
    %10 = arith.subf %9, %0 : vector<2x512xf32>
    %11 = arith.divf %10, %6 : vector<2x512xf32>
    %cst_6 = arith.constant -5.000000e-01 : f32
    %12 = vector.broadcast %cst_6 : f32 to vector<2x512xf32>
    %13 = arith.mulf %12, %11 : vector<2x512xf32>
    %14 = arith.mulf %13, %11 : vector<2x512xf32>
    %15 = math.log %6 : vector<2x512xf32>
    %16 = arith.subf %14, %15 : vector<2x512xf32>
    %cst_7 = arith.constant 0.918938517 : f32
    %17 = vector.broadcast %cst_7 : f32 to vector<2x512xf32>
    %18 = arith.subf %16, %17 : vector<2x512xf32>
    %c0_8 = arith.constant 0 : index
    %c0_9 = arith.constant 0 : index
    %19 = vector.load %arg4[%c0_8, %c0_9] : memref<2x512xf32, #tpu.memory_space<vmem>>, vector<2x512xf32>
    tpu.vector_store %arg4[%c0_8, %c0_9], %9 {strides = array<i32>} : memref<2x512xf32, #tpu.memory_space<vmem>>, vector<2x512xf32>,
    %cst_10 = arith.constant dense<0.000000e+00> : vector<2xf32>
    %20 = vector.multi_reduction <add>, %18, %cst_10 [1] : vector<2x512xf32> to vector<2xf32>
    %21 = vector.shape_cast %20 : vector<2xf32> to vector<2x1xf32>
    %c0_11 = arith.constant 0 : index
    %c0_12 = arith.constant 0 : index
    %22 = vector.load %arg5[%c0_11, %c0_12] : memref<2x1xf32, #tpu.memory_space<vmem>>, vector<2x1xf32>
    tpu.vector_store %arg5[%c0_11, %c0_12], %21 {strides = array<i32>} : memref<2x1xf32, #tpu.memory_space<vmem>>, vector<2x1xf32>,
    return
  }
  func.func @transform_0(%arg0: i32) -> (i32, i32) {
    %c0_i32 = arith.constant 0 : i32
    %c0_i32_0 = arith.constant 0 : i32
    %c0_i32_1 = arith.constant 0 : i32
    return %c0_i32, %c0_i32_0 : i32, i32
  }
  func.func @transform_1(%arg0: i32) -> (i32, i32) {
    %c0_i32 = arith.constant 0 : i32
    %c0_i32_0 = arith.constant 0 : i32
    %c0_i32_1 = arith.constant 0 : i32
    return %c0_i32, %c0_i32_0 : i32, i32
  }
  func.func @transform_2(%arg0: i32) -> (i32, i32) {
    %c0_i32 = arith.constant 0 : i32
    %c0_i32_0 = arith.constant 0 : i32
    %c0_i32_1 = arith.constant 0 : i32
    return %c0_i32, %c0_i32_0 : i32, i32
  }
  func.func @transform_3(%arg0: i32) -> (i32, i32) {
    %c0_i32 = arith.constant 0 : i32
    %c0_i32_0 = arith.constant 0 : i32
    %c0_i32_1 = arith.constant 0 : i32
    return %c0_i32, %c0_i32_0 : i32, i32
  }
  func.func @transform_4(%arg0: i32) -> (i32, i32) {
    %c0_i32 = arith.constant 0 : i32
    %c0_i32_0 = arith.constant 0 : i32
    %c0_i32_1 = arith.constant 0 : i32
    return %c0_i32, %c0_i32_0 : i32, i32
  }
}

</mosaic_0001>

<llo_original>
// kernel: tpu_custom_call.1
$region0: #{tpu_custom_call.1}
  #allocation0 [shape = 'u32[]', space=smem, size = 0x4, offset = 0x4, fixed_abs, tag = 'smem constant byte address 0x4 - core index']
  #allocation1 [shape = 'u32[72,128]{1,0:T(1,128)}', space=vmem, size = 0x9000, scoped, tag = 'internal scratch']
  %s0 = inlined_call_operand.hbm [shape: f32[2,512], index: 0, kind: input, shape index: {}]
  %s1 = inlined_call_operand.hbm [shape: f32[2,512], index: 1, kind: input, shape index: {}]
  %s2 = inlined_call_operand.hbm [shape: f32[2,512], index: 2, kind: input, shape index: {}]
  %s3 = inlined_call_operand.hbm [shape: f32[2,512], index: 3, kind: output, shape index: {0}]
  %s4 = inlined_call_operand.vmem [shape: f32[2,1], index: 4, kind: output, shape index: {1}]
  %5 = xla_tuple %s3, %s4
  %s6 = sld [smem:[#allocation0]]
  $region42: #{tpu_custom_call.1} parent=0
    _
  %s8 = ssub.s32 1, %s6
  %s9 = scalar_select 0, %s8, %s6
  $region1: #{tpu_custom_call.1} parent=0
    #allocation2 [shape = 'u8[4096]{0}', space=vmem, size = 0x1000, scoped, tag = 'input window, operand 0, single buffered']
    #allocation3 [shape = 's32[1]{0}', space=sflag, size = 0x4, scoped, tag = 'scoped memory for tpu_custom_call.1']
    #allocation4 [shape = 's32[1]{0}', space=sflag, size = 0x4, scoped, tag = 'scoped memory for tpu_custom_call.1']
    #allocation5 [shape = 'u8[4096]{0}', space=vmem, size = 0x1000, scoped, tag = 'input window, operand 1, single buffered']
    #allocation6 [shape = 's32[1]{0}', space=sflag, size = 0x4, scoped, tag = 'scoped memory for tpu_custom_call.1']
    #allocation7 [shape = 'u8[4096]{0}', space=vmem, size = 0x1000, scoped, tag = 'input window, operand 2, single buffered']
    #allocation8 [shape = 'u8[4096]{0}', space=vmem, size = 0x1000, scoped, tag = 'output window, operand 0, single buffered']
    %10 = vsyncpa [#allocation3], 0
    %11 = vsyncpa [#allocation6], 0
    %12 = vsyncpa [#allocation4], 0
    // Predicated region
    $region2: #{tpu_custom_call.1} parent=1 // pred_check
      _
    $region3: #{tpu_custom_call.1} parent=1 // pred_check_branch
      %14 = sbr.rel (0) target = $region5
    $region4: #{tpu_custom_call.1} parent=1 // pred_region
      %16 = vsyncadd [#allocation3], 0
      %s18 = sshll.u32 %s0, 4
      %s19 = int_to_ptr.hbm [resolvable:$true] %s18
      %s20 = sshll.u32 [#allocation2], 4
      %s21 = int_to_ptr.vmem [resolvable:$true] %s20
      %23 = dma.hbm_to_vmem [thread:$0]  %s19, 128, %s21, [#allocation3]
    $region5: #{tpu_custom_call.1} parent=1 // pred_fallthru
      _
    // Predicated region
    $region6: #{tpu_custom_call.1} parent=1 // pred_check
      _
    $region7: #{tpu_custom_call.1} parent=1 // pred_check_branch
      %25 = sbr.rel (0) target = $region9
    $region8: #{tpu_custom_call.1} parent=1 // pred_region
      %27 = vsyncadd [#allocation6], 0
      %s29 = sshll.u32 %s1, 4
      %s30 = int_to_ptr.hbm [resolvable:$true] %s29
      %s31 = sshll.u32 [#allocation5], 4
      %s32 = int_to_ptr.vmem [resolvable:$true] %s31
      %34 = dma.hbm_to_vmem [thread:$0]  %s30, 128, %s32, [#allocation6]
    $region9: #{tpu_custom_call.1} parent=1 // pred_fallthru
      _
    // Predicated region
    $region10: #{tpu_custom_call.1} parent=1 // pred_check
      _
    $region11: #{tpu_custom_call.1} parent=1 // pred_check_branch
      %36 = sbr.rel (0) target = $region13
    $region12: #{tpu_custom_call.1} parent=1 // pred_region
      %38 = vsyncadd [#allocation6], 0
      %s40 = sshll.u32 %s2, 4
      %s41 = int_to_ptr.hbm [resolvable:$true] %s40
      %s42 = sshll.u32 [#allocation7], 4
      %s43 = int_to_ptr.vmem [resolvable:$true] %s42
      %45 = dma.hbm_to_vmem [thread:$0]  %s41, 128, %s43, [#allocation6]
    $region13: #{tpu_custom_call.1} parent=1 // pred_fallthru
      _
    // Predicated region
    $region14: #{tpu_custom_call.1} parent=1 // pred_check
      _
    $region15: #{tpu_custom_call.1} parent=1 // pred_check_branch
      %47 = sbr.rel (0) target = $region17
    $region16: #{tpu_custom_call.1} parent=1 // pred_region
      %49 = dma.done [#allocation3], 128
    $region17: #{tpu_custom_call.1} parent=1 // pred_fallthru
      _
    // Predicated region
    $region18: #{tpu_custom_call.1} parent=1 // pred_check
      _
    $region19: #{tpu_custom_call.1} parent=1 // pred_check_branch
      %51 = sbr.rel (0) target = $region21
    $region20: #{tpu_custom_call.1} parent=1 // pred_region
      %53 = dma.done [#allocation6], 128
    $region21: #{tpu_custom_call.1} parent=1 // pred_fallthru
      _
    // Predicated region
    $region22: #{tpu_custom_call.1} parent=1 // pred_check
      _
    $region23: #{tpu_custom_call.1} parent=1 // pred_check_branch
      %55 = sbr.rel (0) target = $region25
    $region24: #{tpu_custom_call.1} parent=1 // pred_region
      %57 = dma.done [#allocation6], 128
    $region25: #{tpu_custom_call.1} parent=1 // pred_fallthru
      _
    %v58 = vld [vmem:[#allocation2] sm:$0xff]
    %v59 = vld [vmem:[#allocation5] sm:$0xff]
    %v60 = vmul.f32 %v59, 0.5
    %v61 = vmul.f32 %v60, 1.442695
    %v62 = vpow.pop %v61
    %v63 = vadd.f32 %v62, 0.0
    %v64 = vld [vmem:[#allocation7] sm:$0xff]
    %v65 = vmul.f32 %v63, %v64
    %v66 = vadd.f32 %v58, %v65
    %v67 = vsub.f32 %v66, %v58
    %v68 = vrcp.pop %v63
    %v69 = vmul.f32 %v63, %v68
    %v70 = vsub.f32 1.0, %v69
    %v71 = vmul.f32 %v68, %v70
    %v72 = vadd.f32 %v68, %v71
    %vm73 = vweird.f32 %v63
    %vm74 = vweird.f32 %v68
    %vm75 = vmor %vm73, %vm74
    %v76 = vsel %vm75, %v68, %v72
    %v77 = vand.u32 2147483647, %v63
    %vm78 = vcmp.eq.f32.partialorder %v77, 8.507059e+37
    %v79 = vand.u32 %v63, 2147483648
    %v80 = vor.u32 1.1754944e-38, %v79
    %v81 = vsel %vm78, %v80, %v76
    %v82 = vmul.f32 %v67, %v81
    %v83 = vmul.f32 %v82, -0.5
    %v84 = vmul.f32 %v83, %v82
    %v85 = vlog2.pop %v63
    %v86 = vmul.f32 %v85, 0.6931472
    %v87 = vsub.f32 %v84, %v86
    %v88 = vsub.f32 %v87, 0.9189385
    %89 = vst [vmem:[#allocation8] sm:$0xff] %v66
    %91 = vst [vmem:[#allocation1] ss:$4 sm:$0xff] %v88
    %v92 = vld.sshfl [vmem:[#allocation1] sm:$0xff pattern:$0x73625140]
    %v93 = vld.sshfl [vmem:[#allocation1 + $0x8] sm:$0xff pattern:$0x73625140]
    %v94 = vld.sshfl [vmem:[#allocation1 + $0x10] sm:$0xff pattern:$0x73625140]
    %v95 = vld.sshfl [vmem:[#allocation1 + $0x18] sm:$0xff pattern:$0x73625140]
    %vm100 = vcmask 1041408
    %v101 = vsel %vm100, %v92, 0.0
    %v102 = vsel %vm100, %v93, 0.0
    %v103 = vadd.f32 %v101, %v102
    %v104 = vsel %vm100, %v94, 0.0
    %v105 = vadd.f32 %v103, %v104
    %v106 = vsel %vm100, %v95, 0.0
    %v107 = vadd.f32 %v105, %v106
    %108 = vadd.xlane.f32.xlu0 %v107
    %v109 = vpop.xlane.xlu0 %108
    %vm110 = vcmask 1024
    %111 = vst.msk [vmem:[%s4] sm:$0x3] %vm110, %v109
    // Predicated region
    $region26: #{tpu_custom_call.1} parent=1 // pred_check
      _
    $region27: #{tpu_custom_call.1} parent=1 // pred_check_branch
      %113 = sbr.rel (0) target = $region29
    $region28: #{tpu_custom_call.1} parent=1 // pred_region
      %115 = vsyncadd [#allocation4], 0
      %s117 = sshll.u32 [#allocation8], 4
      %s118 = int_to_ptr.vmem [resolvable:$true] %s117
      %s119 = sshll.u32 %s3, 4
      %s120 = int_to_ptr.hbm [resolvable:$true] %s119
      %122 = dma.vmem_to_hbm [thread:$0]  %s118, 128, %s120, [#allocation4]
    $region29: #{tpu_custom_call.1} parent=1 // pred_fallthru
      _
    // Predicated region
    $region30: #{tpu_custom_call.1} parent=1 // pred_check
      _
    $region31: #{tpu_custom_call.1} parent=1 // pred_check_branch
      %124 = sbr.rel (0) target = $region33
    $region32: #{tpu_custom_call.1} parent=1 // pred_region
      _
    $region33: #{tpu_custom_call.1} parent=1 // pred_fallthru
      _
    // Predicated region
    $region34: #{tpu_custom_call.1} parent=1 // pred_check
      _
    $region35: #{tpu_custom_call.1} parent=1 // pred_check_branch
      %126 = sbr.rel (0) target = $region37
    $region36: #{tpu_custom_call.1} parent=1 // pred_region
      %128 = dma.done [#allocation4], 128
    $region37: #{tpu_custom_call.1} parent=1 // pred_fallthru
      _
    // Predicated region
    $region38: #{tpu_custom_call.1} parent=1 // pred_check
      _
    $region39: #{tpu_custom_call.1} parent=1 // pred_check_branch
      %130 = sbr.rel (0) target = $region41
    $region40: #{tpu_custom_call.1} parent=1 // pred_region
      _
    $region41: #{tpu_custom_call.1} parent=1 // pred_fallthru
      _
    %131 = vsyncpa [#allocation3], 1
    %132 = vsyncpa [#allocation6], 1
    %133 = vsyncpa [#allocation4], 1

</llo_original>
